<compile_context>
chip_gen: v5e
topology: v5e:2x2
jax: 0.10.0
libtpu: 0.0.40
codegen_flags: <defaults>
</compile_context>

<pallas_src>
import numpy as np
import jax
import jax.numpy as jnp
from jax import lax
from jax.experimental import pallas as pl
from jax.experimental.pallas import tpu as pltpu


def _round_up(x, m):
    return (x + m - 1) // m * m


def _make_onehot_gather_kernel(level_num, tile_n, d_pad, vocab_pads):
    """Fused hierarchical-embedding gather (one-hot MXU matmul per level).

    Kernel refs:
      idx_ref    : VMEM (tile_n, level_num) int32, 0-based row ids per level
      table refs : level_num whole-array VMEM refs, (V_pad_l, d_pad) f32,
                   column-shifted into disjoint ranges of the d_pad slab
      out_ref    : VMEM (tile_n, d_pad) f32
    """

    def kernel(idx_ref, *refs):
        table_refs = refs[:level_num]
        out_ref = refs[level_num]
        idx = idx_ref[...]                                    # (tile_n, L) int32
        acc = jnp.zeros((tile_n, d_pad), jnp.float32)
        for l in range(level_num):
            v_pad = vocab_pads[l]
            sel = idx[:, l:l + 1]                             # (tile_n, 1) column
            iota = lax.broadcasted_iota(jnp.int32, (tile_n, v_pad), 1)
            onehot = (iota == sel).astype(jnp.float32)        # VPU compare
            # MXU row-select; columns of the levels are disjoint, so summing
            # the per-level results reproduces torch.cat(..., dim=1).
            acc = acc + jnp.dot(onehot, table_refs[l][...],
                                preferred_element_type=jnp.float32)
        out_ref[...] = acc                                    # lane-dense store

    return kernel


def _fused_hier_gather(idx2d, padded_tables, *, num_codes, n_pad, tile_n,
                       d_total, d_pad, padded=False):
    level_num = len(padded_tables)
    vocab_pads = tuple(int(t.shape[0]) for t in padded_tables)
    grid = (n_pad // tile_n,)
    kernel = _make_onehot_gather_kernel(level_num, tile_n, d_pad, vocab_pads)

    # Honest HBM traffic: tables + indices read once, output written once.
    table_bytes = 4 * sum(v * d_pad for v in vocab_pads)
    idx_bytes = 4 * n_pad * level_num
    out_bytes = 4 * n_pad * d_pad
    bytes_accessed = table_bytes + idx_bytes + out_bytes
    flops = 2 * n_pad * d_pad * sum(vocab_pads)               # one-hot matmuls

    # VMEM: tables single-buffered (whole-array VMEM, fetched once); the
    # idx / output tiles are double-buffered by the automatic pipeline.
    vmem_need = table_bytes + 2 * 4 * tile_n * (d_pad + level_num)
    vmem_limit = int(min(max(2 * vmem_need, 32 * 1024 * 1024),
                         100 * 1024 * 1024))

    out_padded = pl.pallas_call(
        kernel,
        out_shape=jax.ShapeDtypeStruct((n_pad, d_pad), jnp.float32),
        grid=grid,
        in_specs=[
            # Per-tile index block (rows in sublanes, levels in lanes).
            pl.BlockSpec((tile_n, level_num), lambda i: (i, 0)),
        ] + [
            # Whole padded table resident in VMEM, single-buffered, DMA'd once.
            pl.BlockSpec(memory_space=pltpu.MemorySpace.VMEM)
            for _ in padded_tables
        ],
        out_specs=pl.BlockSpec((tile_n, d_pad), lambda i: (i, 0)),
        compiler_params=pltpu.CompilerParams(
            dimension_semantics=("parallel",),     # independent row tiles
            vmem_limit_bytes=vmem_limit,
        ),
        cost_estimate=pl.CostEstimate(
            flops=int(flops), transcendentals=0,
            bytes_accessed=int(bytes_accessed)),
    )(idx2d, *padded_tables)

    if padded:
        # Consumers that can take the lane-dense slab avoid the extra slice pass.
        return out_padded                           # (n_pad, d_pad)
    return out_padded[:num_codes, :d_total]


class HierarchicalEmbeddingPallas:
    """JAX/Pallas port of HierarchicalEmbedding (forward pass only)."""

    def __init__(self, code_levels, code_num_in_levels, code_dims, key, *, tile_n=512):
        assert len(code_num_in_levels) == len(code_dims)
        self.level_num = len(code_num_in_levels)
        self.vocab_sizes = [int(v) for v in code_num_in_levels]
        self.code_dims = [int(d) for d in code_dims]
        self.d_total = int(sum(self.code_dims))
        self.d_pad = _round_up(self.d_total, 128)

        # nn.Embedding default init: N(0, 1)
        keys = jax.random.split(key, self.level_num)
        self.tables = [
            jax.random.normal(k, (v, d), dtype=jnp.float32)
            for k, v, d in zip(keys, self.vocab_sizes, self.code_dims)
        ]

        # One-time layout plumbing: each level's table sits at its column
        # offset inside a lane-dense, 128-aligned slab; vocab rows padded to
        # a multiple of 8 sublanes (padding rows are never selected).
        offsets = np.cumsum([0] + self.code_dims[:-1]).tolist()
        self.col_offsets = offsets
        self.padded_tables = []
        for t, off in zip(self.tables, offsets):
            v_pad = _round_up(int(t.shape[0]), 8)
            pt = jnp.zeros((v_pad, self.d_pad), jnp.float32)
            pt = lax.dynamic_update_slice(pt, t, (0, off))
            self.padded_tables.append(pt)

        self._tile_req = _round_up(max(8, int(tile_n)), 8)   # always x8
        self.update_code_levels(code_levels)

    def update_code_levels(self, code_levels):
        """(Re)bake the 0-based, clipped, row-padded index matrix and tiling."""
        self.code_levels = jnp.asarray(code_levels, dtype=jnp.int32)  # (N, L), 1-based
        self.num_codes = int(self.code_levels.shape[0])

        n8 = _round_up(self.num_codes, 8)
        if n8 <= 8:
            self.tile_n = 8
        else:
            # Aim for >= 2 grid steps so both v7x TensorCores get work.
            half = _round_up(n8 // 2, 8)
            self.tile_n = max(8, min(self._tile_req, half))
        self.n_pad = _round_up(n8, self.tile_n)

        # 0-based ("- 1" as in the torch code), clipped to the valid range
        # (torch would raise on OOB / 0-padding codes). Padding rows use 0.
        cols = [jnp.clip(self.code_levels[:, l] - 1, 0, self.vocab_sizes[l] - 1)
                for l in range(self.level_num)]
        idx = jnp.stack(cols, axis=1).astype(jnp.int32)       # (N, L)
        self.idx2d = jnp.pad(idx, ((0, self.n_pad - self.num_codes), (0, 0)))

    def __call__(self, input=None, *, padded=False):
        return _fused_hier_gather(
            self.idx2d, self.padded_tables,
            num_codes=self.num_codes, n_pad=self.n_pad, tile_n=self.tile_n,
            d_total=self.d_total, d_pad=self.d_pad, padded=padded)

    def reference(self):
        # pure-JAX reference for correctness checking
        embs = [jnp.take(self.tables[l], self.code_levels[:, l] - 1, axis=0)
                for l in range(self.level_num)]
        return jnp.concatenate(embs, axis=1)


if __name__ == "__main__":
    key = jax.random.PRNGKey(0)
    k_lvl, k_param = jax.random.split(key)

    # Small synthetic hierarchy (stands in for ./code_levels.npy):
    num_codes = 16
    code_num_in_levels = [4, 8, 16]   # vocab size per level
    code_dims = [16, 32, 32]          # embedding dim per level -> concat dim = 80

    lvl_keys = jax.random.split(k_lvl, len(code_num_in_levels))
    code_levels = jnp.stack(
        [
            jax.random.randint(k, (num_codes,), 1, cn + 1, dtype=jnp.int32)  # 1-based
            for k, cn in zip(lvl_keys, code_num_in_levels)
        ],
        axis=1,
    )  # (num_codes, level_num)

    module = HierarchicalEmbeddingPallas(code_levels, code_num_in_levels,
                                         code_dims, k_param)

    out = jax.block_until_ready(module())
    ref = module.reference()

    assert out.shape == (num_codes, sum(code_dims)), out.shape
    assert out.dtype == jnp.float32
    assert jnp.allclose(out, ref, atol=1e-5, rtol=1e-5), "mismatch vs pure-JAX reference"

    print("KERNEL_OK")
</pallas_src>

<mosaic_0001>
module attributes {stable_mosaic.version = 11 : i64} {
  func.func @kernel(%arg0: i32, %arg1: memref<8x3xi32, #tpu.memory_space<vmem>>, %arg2: memref<8x128xf32, #tpu.memory_space<vmem>>, %arg3: memref<8x128xf32, #tpu.memory_space<vmem>>, %arg4: memref<16x128xf32, #tpu.memory_space<vmem>>, %arg5: memref<8x128xf32, #tpu.memory_space<vmem>>) attributes {dimension_semantics = [#tpu.dimension_semantics<parallel>], iteration_bounds = array<i64: 2>, scalar_prefetch = 0 : i64, scratch_operands = 0 : i64, tpu.core_type = #tpu.core_type<tc>, window_params = [{transform_indices = @transform_0, window_bounds = array<i64: 8, 3>}, {pipeline_mode = #tpu.pipeline_mode<synchronous>, transform_indices = @transform_1, window_bounds = array<i64: 8, 128>}, {pipeline_mode = #tpu.pipeline_mode<synchronous>, transform_indices = @transform_2, window_bounds = array<i64: 8, 128>}, {pipeline_mode = #tpu.pipeline_mode<synchronous>, transform_indices = @transform_3, window_bounds = array<i64: 16, 128>}, {transform_indices = @transform_4, window_bounds = array<i64: 8, 128>}]} {
    %c0 = arith.constant 0 : index
    %c0_0 = arith.constant 0 : index
    %0 = vector.load %arg1[%c0, %c0_0] : memref<8x3xi32, #tpu.memory_space<vmem>>, vector<8x3xi32>
    %cst = arith.constant 0.000000e+00 : f32
    %1 = vector.broadcast %cst : f32 to vector<8x128xf32>
    %2 = vector.extract_strided_slice %0 {offsets = [0, 0], sizes = [8, 1], strides = [1, 1]} : vector<8x3xi32> to vector<8x1xi32>
    %3 = tpu.iota {dimensions = array<i32: 1>} : vector<8x8xi32>
    %4 = vector.broadcast %2 : vector<8x1xi32> to vector<8x8xi32>
    %5 = arith.cmpi eq, %3, %4 : vector<8x8xi32>
    %6 = arith.extui %5 : vector<8x8xi1> to vector<8x8xi32>
    %7 = arith.sitofp %6 : vector<8x8xi32> to vector<8x8xf32>
    %c0_1 = arith.constant 0 : index
    %c0_2 = arith.constant 0 : index
    %8 = vector.load %arg2[%c0_1, %c0_2] : memref<8x128xf32, #tpu.memory_space<vmem>>, vector<8x128xf32>
    %cst_3 = arith.constant dense<0.000000e+00> : vector<8x128xf32>
    %9 = tpu.matmul %7, %8, %cst_3 {dimension_numbers = #tpu.dot_dimension_numbers<[1], [0], [0], [1], [0, 0, 1, 1], [], []>} : vector<8x8xf32>, vector<8x128xf32>, vector<8x128xf32> -> vector<8x128xf32>
    %10 = arith.addf %1, %9 : vector<8x128xf32>
    %11 = vector.extract_strided_slice %0 {offsets = [0, 1], sizes = [8, 1], strides = [1, 1]} : vector<8x3xi32> to vector<8x1xi32>
    %12 = tpu.iota {dimensions = array<i32: 1>} : vector<8x8xi32>
    %13 = vector.broadcast %11 : vector<8x1xi32> to vector<8x8xi32>
    %14 = arith.cmpi eq, %12, %13 : vector<8x8xi32>
    %15 = arith.extui %14 : vector<8x8xi1> to vector<8x8xi32>
    %16 = arith.sitofp %15 : vector<8x8xi32> to vector<8x8xf32>
    %c0_4 = arith.constant 0 : index
    %c0_5 = arith.constant 0 : index
    %17 = vector.load %arg3[%c0_4, %c0_5] : memref<8x128xf32, #tpu.memory_space<vmem>>, vector<8x128xf32>
    %cst_6 = arith.constant dense<0.000000e+00> : vector<8x128xf32>
    %18 = tpu.matmul %16, %17, %cst_6 {dimension_numbers = #tpu.dot_dimension_numbers<[1], [0], [0], [1], [0, 0, 1, 1], [], []>} : vector<8x8xf32>, vector<8x128xf32>, vector<8x128xf32> -> vector<8x128xf32>
    %19 = arith.addf %10, %18 : vector<8x128xf32>
    %20 = vector.extract_strided_slice %0 {offsets = [0, 2], sizes = [8, 1], strides = [1, 1]} : vector<8x3xi32> to vector<8x1xi32>
    %21 = tpu.iota {dimensions = array<i32: 1>} : vector<8x16xi32>
    %22 = vector.broadcast %20 : vector<8x1xi32> to vector<8x16xi32>
    %23 = arith.cmpi eq, %21, %22 : vector<8x16xi32>
    %24 = arith.extui %23 : vector<8x16xi1> to vector<8x16xi32>
    %25 = arith.sitofp %24 : vector<8x16xi32> to vector<8x16xf32>
    %c0_7 = arith.constant 0 : index
    %c0_8 = arith.constant 0 : index
    %26 = vector.load %arg4[%c0_7, %c0_8] : memref<16x128xf32, #tpu.memory_space<vmem>>, vector<16x128xf32>
    %cst_9 = arith.constant dense<0.000000e+00> : vector<8x128xf32>
    %27 = tpu.matmul %25, %26, %cst_9 {dimension_numbers = #tpu.dot_dimension_numbers<[1], [0], [0], [1], [0, 0, 1, 1], [], []>} : vector<8x16xf32>, vector<16x128xf32>, vector<8x128xf32> -> vector<8x128xf32>
    %28 = arith.addf %19, %27 : vector<8x128xf32>
    %c0_10 = arith.constant 0 : index
    %c0_11 = arith.constant 0 : index
    %29 = vector.load %arg5[%c0_10, %c0_11] : memref<8x128xf32, #tpu.memory_space<vmem>>, vector<8x128xf32>
    tpu.vector_store %arg5[%c0_10, %c0_11], %28 {strides = array<i32>} : memref<8x128xf32, #tpu.memory_space<vmem>>, vector<8x128xf32>,
    return
  }
  func.func @transform_0(%arg0: i32) -> (i32, i32) {
    %c0_i32 = arith.constant 0 : i32
    %c0_i32_0 = arith.constant 0 : i32
    return %arg0, %c0_i32 : i32, i32
  }
  func.func @transform_1(%arg0: i32) -> (i32, i32) {
    %c0_i32 = arith.constant 0 : i32
    %c0_i32_0 = arith.constant 0 : i32
    %c0_i32_1 = arith.constant 0 : i32
    return %c0_i32, %c0_i32_0 : i32, i32
  }
  func.func @transform_2(%arg0: i32) -> (i32, i32) {
    %c0_i32 = arith.constant 0 : i32
    %c0_i32_0 = arith.constant 0 : i32
    %c0_i32_1 = arith.constant 0 : i32
    return %c0_i32, %c0_i32_0 : i32, i32
  }
  func.func @transform_3(%arg0: i32) -> (i32, i32) {
    %c0_i32 = arith.constant 0 : i32
    %c0_i32_0 = arith.constant 0 : i32
    %c0_i32_1 = arith.constant 0 : i32
    return %c0_i32, %c0_i32_0 : i32, i32
  }
  func.func @transform_4(%arg0: i32) -> (i32, i32) {
    %c0_i32 = arith.constant 0 : i32
    %c0_i32_0 = arith.constant 0 : i32
    return %arg0, %c0_i32 : i32, i32
  }
}

</mosaic_0001>

<llo_original>
// kernel: tpu_custom_call.1
$region0: #{tpu_custom_call.1}
  #allocation0 [shape = 'u32[]', space=smem, size = 0x4, offset = 0x4, fixed_abs, tag = 'smem constant byte address 0x4 - core index']
  #allocation1 [shape = 'u32[72,128]{1,0:T(1,128)}', space=vmem, size = 0x9000, scoped, tag = 'internal scratch']
  %s0 = inlined_call_operand.vmem [shape: s32[16,3], index: 0, kind: input, shape index: {}]
  %s1 = inlined_call_operand.hbm [shape: f32[8,128], index: 1, kind: input, shape index: {}]
  %s2 = inlined_call_operand.hbm [shape: f32[8,128], index: 2, kind: input, shape index: {}]
  %s3 = inlined_call_operand.vmem [shape: f32[16,128], index: 3, kind: input, shape index: {}]
  %s4 = inlined_call_operand.hbm [shape: f32[16,128], index: 4, kind: output, shape index: {}]
  %s5 = sld [smem:[#allocation0]]
  $region57: #{tpu_custom_call.1} parent=0
    _
  %s7 = ssub.s32 1, %s5
  %s8 = scalar_select 0, %s7, %s5
  $region1: #{tpu_custom_call.1} parent=0
    #allocation2 [shape = 'u8[4096]{0}', space=vmem, size = 0x1000, scoped, tag = 'input window, operand 1, single buffered']
    #allocation3 [shape = 's32[2]{0}', space=sflag, size = 0x8, scoped, tag = 'scoped memory for tpu_custom_call.1']
    #allocation4 [shape = 's32[2]{0}', space=sflag, size = 0x8, scoped, tag = 'scoped memory for tpu_custom_call.1']
    #allocation5 [shape = 'u8[4096]{0}', space=vmem, size = 0x1000, scoped, tag = 'input window, operand 2, single buffered']
    #allocation6 [shape = 's32[1]{0}', space=sflag, size = 0x4, scoped, tag = 'scoped memory for tpu_custom_call.1']
    #allocation7 [shape = 'u8[8192]{0}', space=vmem, size = 0x2000, scoped, tag = 'output window, operand 0']
    %9 = vsyncpa [#allocation3], 0
    %10 = vsyncpa [#allocation6], 0
    %11 = vsyncpa [#allocation4], 0
    %s12 = scalar_lea.sflag [#allocation4], 1
    %13 = vsyncpa %s12, 0
    loop: start=0, step=1, limit=4
    $region2: #{tpu_custom_call.1} parent=1 // loop_pre_header
      _
    $region3: #{tpu_custom_call.1} parent=1 // loop_header
      %s15 = sphi 0, %s19
      %p16 = scmp.ge.s32.totalorder %s15, 4
      %s25 = sphi 0, %s27
      %s28 = sphi 0, %s25
      %s29 = sphi 0, %s28
      %s45 = sphi 0, %s29
      %s49 = sphi 0, %s49
      %s51 = sphi 0, %s49
      %s52 = sphi 0, %s51
      %s66 = sphi 0, %s52
      %s70 = sphi 0, %s70
      %s72 = sphi 0, %s70
      %s73 = sphi 0, %s72
      %s87 = sphi 0, %s73
      %s91 = sphi 0, %s91
      %s93 = sphi 0, %s91
      %s94 = sphi 0, %s93
      %s108 = sphi 0, %s94
      %s114 = sphi 0, %s116
      %s117 = sphi 0, %s114
      %s118 = sphi 0, %s117
      %s134 = sphi 0, %s118
    $region4: #{tpu_custom_call.1} parent=1 // loop_header_branch
      %18 = sbr.rel (%p16) target = $region8
    $region5: #{tpu_custom_call.1} parent=1 // loop_body
      %s20 = ssub.s32 %s15, 1
      %s21 = ssub.s32 %s15, 2
      %s22 = sadd.s32 %s15, 1
      %s23 = ssub.s32 %s15, %s22
      %p24 = scmp.eq.s32.totalorder %s23, 0
      %s26 = sadd.s32 %s25, 1
      %s27 = scalar_select %p24, %s25, %s26
      %p30 = pneg %p24
      %p31 = scmp.eq.s32.totalorder %s15, 1
      %p32 = por %p30, %p31
      %p33 = scmp.ne.s32.totalorder %s25, %s28
      %p34 = scmp.eq.s32.totalorder %s15, 0
      %p35 = por %p33, %p34
      %p36 = scmp.ne.s32.totalorder %s25, %s28
      %p37 = scmp.eq.s32.totalorder %s20, 1
      %p38 = por %p36, %p37
      %p39 = scmp.ne.s32.totalorder %s28, %s29
      %p40 = scmp.eq.s32.totalorder %s20, 0
      %p41 = por %p39, %p40
      %p42 = scmp.ne.s32.totalorder %s28, %s29
      %p43 = scmp.eq.s32.totalorder %s21, 1
      %p44 = por %p42, %p43
      %p46 = scmp.ne.s32.totalorder %s29, %s45
      %p47 = scmp.eq.s32.totalorder %s21, 0
      %p48 = por %p46, %p47
      %s50 = sadd.s32 %s49, 1
      %p53 = scmp.eq.s32.totalorder %s15, 1
      %p54 = scmp.ne.s32.totalorder %s49, %s51
      %p55 = scmp.eq.s32.totalorder %s15, 0
      %p56 = por %p54, %p55
      %p57 = scmp.ne.s32.totalorder %s49, %s51
      %p58 = scmp.eq.s32.totalorder %s20, 1
      %p59 = por %p57, %p58
      %p60 = scmp.ne.s32.totalorder %s51, %s52
      %p61 = scmp.eq.s32.totalorder %s20, 0
      %p62 = por %p60, %p61
      %p63 = scmp.ne.s32.totalorder %s51, %s52
      %p64 = scmp.eq.s32.totalorder %s21, 1
      %p65 = por %p63, %p64
      %p67 = scmp.ne.s32.totalorder %s52, %s66
      %p68 = scmp.eq.s32.totalorder %s21, 0
      %p69 = por %p67, %p68
      %s71 = sadd.s32 %s70, 1
      %p74 = scmp.eq.s32.totalorder %s15, 1
      %p75 = scmp.ne.s32.totalorder %s70, %s72
      %p76 = scmp.eq.s32.totalorder %s15, 0
      %p77 = por %p75, %p76
      %p78 = scmp.ne.s32.totalorder %s70, %s72
      %p79 = scmp.eq.s32.totalorder %s20, 1
      %p80 = por %p78, %p79
      %p81 = scmp.ne.s32.totalorder %s72, %s73
      %p82 = scmp.eq.s32.totalorder %s20, 0
      %p83 = por %p81, %p82
      %p84 = scmp.ne.s32.totalorder %s72, %s73
      %p85 = scmp.eq.s32.totalorder %s21, 1
      %p86 = por %p84, %p85
      %p88 = scmp.ne.s32.totalorder %s73, %s87
      %p89 = scmp.eq.s32.totalorder %s21, 0
      %p90 = por %p88, %p89
      %s92 = sadd.s32 %s91, 1
      %p95 = scmp.eq.s32.totalorder %s15, 1
      %p96 = scmp.ne.s32.totalorder %s91, %s93
      %p97 = scmp.eq.s32.totalorder %s15, 0
      %p98 = por %p96, %p97
      %p99 = scmp.ne.s32.totalorder %s91, %s93
      %p100 = scmp.eq.s32.totalorder %s20, 1
      %p101 = por %p99, %p100
      %p102 = scmp.ne.s32.totalorder %s93, %s94
      %p103 = scmp.eq.s32.totalorder %s20, 0
      %p104 = por %p102, %p103
      %p105 = scmp.ne.s32.totalorder %s93, %s94
      %p106 = scmp.eq.s32.totalorder %s21, 1
      %p107 = por %p105, %p106
      %p109 = scmp.ne.s32.totalorder %s94, %s108
      %p110 = scmp.eq.s32.totalorder %s21, 0
      %p111 = por %p109, %p110
      %s112 = ssub.s32 %s15, %s22
      %p113 = scmp.eq.s32.totalorder %s112, 0
      %s115 = sadd.s32 %s114, 1
      %s116 = scalar_select %p113, %s114, %s115
      %p119 = pneg %p113
      %p120 = scmp.eq.s32.totalorder %s15, 1
      %p121 = por %p119, %p120
      %p122 = scmp.ne.s32.totalorder %s114, %s117
      %p123 = scmp.eq.s32.totalorder %s15, 0
      %p124 = por %p122, %p123
      %p125 = scmp.ne.s32.totalorder %s114, %s117
      %p126 = scmp.eq.s32.totalorder %s20, 1
      %p127 = por %p125, %p126
      %p128 = scmp.ne.s32.totalorder %s117, %s118
      %p129 = scmp.eq.s32.totalorder %s20, 0
      %p130 = por %p128, %p129
      %p131 = scmp.ne.s32.totalorder %s117, %s118
      %p132 = scmp.eq.s32.totalorder %s21, 1
      %p133 = por %p131, %p132
      %p135 = scmp.ne.s32.totalorder %s118, %s134
      %p136 = scmp.eq.s32.totalorder %s21, 0
      %p137 = por %p135, %p136
      %p138 = scmp.le.s32.totalorder 1, %s15
      %p139 = scmp.lt.s32.totalorder %s15, 3
      %p140 = pnand %p138, %p139
      %p141 = pneg %p140
      // Predicated region
      $region9: #{tpu_custom_call.1} parent=5 // pred_check
        _
      $region10: #{tpu_custom_call.1} parent=5 // pred_check_branch
        %143 = sbr.rel (%p140) target = $region12
      $region11: #{tpu_custom_call.1} parent=5 // pred_region
        %s144 = ssub.s32 %s15, 1
        // Predicated region
        $region13: #{tpu_custom_call.1} parent=11 // pred_check
          %p145 = pneg %p62
        $region14: #{tpu_custom_call.1} parent=11 // pred_check_branch
          %147 = sbr.rel (%p145) target = $region16
        $region15: #{tpu_custom_call.1} parent=11 // pred_region
          %149 = vsyncadd [#allocation3], 0
          %s151 = sshll.u32 %s1, 4
          %s152 = int_to_ptr.hbm [resolvable:$true] %s151
          %s153 = sshll.u32 [#allocation2], 4
          %s154 = int_to_ptr.vmem [resolvable:$true] %s153
          %156 = dma.hbm_to_vmem [thread:$0]  %s152, 128, %s154, [#allocation3]
        $region16: #{tpu_custom_call.1} parent=11 // pred_fallthru
          _
        // Predicated region
        $region17: #{tpu_custom_call.1} parent=11 // pred_check
          %p157 = pneg %p83
        $region18: #{tpu_custom_call.1} parent=11 // pred_check_branch
          %159 = sbr.rel (%p157) target = $region20
        $region19: #{tpu_custom_call.1} parent=11 // pred_region
          %161 = vsyncadd [#allocation6], 0
          %s163 = sshll.u32 %s2, 4
          %s164 = int_to_ptr.hbm [resolvable:$true] %s163
          %s165 = sshll.u32 [#allocation5], 4
          %s166 = int_to_ptr.vmem [resolvable:$true] %s165
          %168 = dma.hbm_to_vmem [thread:$0]  %s164, 128, %s166, [#allocation6]
        $region20: #{tpu_custom_call.1} parent=11 // pred_fallthru
          _
        // Predicated region
        $region21: #{tpu_custom_call.1} parent=11 // pred_check
          %p169 = pneg %p104
        $region22: #{tpu_custom_call.1} parent=11 // pred_check_branch
          %171 = sbr.rel (%p169) target = $region24
        $region23: #{tpu_custom_call.1} parent=11 // pred_region
          _
        $region24: #{tpu_custom_call.1} parent=11 // pred_fallthru
          _
      $region12: #{tpu_custom_call.1} parent=5 // pred_fallthru
        _
      %p172 = scmp.lt.s32.totalorder %s15, 2
      // Predicated region
      $region25: #{tpu_custom_call.1} parent=5 // pred_check
        %p173 = pneg %p172
      $region26: #{tpu_custom_call.1} parent=5 // pred_check_branch
        %175 = sbr.rel (%p173) target = $region28
      $region27: #{tpu_custom_call.1} parent=5 // pred_region
        // Predicated region
        $region29: #{tpu_custom_call.1} parent=27 // pred_check
          %p176 = pneg %p35
        $region30: #{tpu_custom_call.1} parent=27 // pred_check_branch
          %178 = sbr.rel (%p176) target = $region32
        $region31: #{tpu_custom_call.1} parent=27 // pred_region
          %p179 = scmp.lt.s32.totalorder %s15, 1
          %s180 = scalar_select %p179, %s15, 1
          %s181 = smul.addr %s180, 8
          %s182 = scalar_lea.vmem %s0, %s181
        $region32: #{tpu_custom_call.1} parent=27 // pred_fallthru
          _
      $region28: #{tpu_custom_call.1} parent=5 // pred_fallthru
        _
      %p183 = scmp.le.s32.totalorder 1, %s15
      %p184 = scmp.lt.s32.totalorder %s15, 3
      %p185 = pnand %p183, %p184
      %p186 = pneg %p185
      // Predicated region
      $region33: #{tpu_custom_call.1} parent=5 // pred_check
        _
      $region34: #{tpu_custom_call.1} parent=5 // pred_check_branch
        %188 = sbr.rel (%p185) target = $region36
      $region35: #{tpu_custom_call.1} parent=5 // pred_region
        %s189 = ssub.s32 %s15, 1
        // Predicated region
        $region37: #{tpu_custom_call.1} parent=35 // pred_check
          %p190 = pneg %p62
        $region38: #{tpu_custom_call.1} parent=35 // pred_check_branch
          %192 = sbr.rel (%p190) target = $region40
        $region39: #{tpu_custom_call.1} parent=35 // pred_region
          %194 = dma.done [#allocation3], 128
        $region40: #{tpu_custom_call.1} parent=35 // pred_fallthru
          _
        // Predicated region
        $region41: #{tpu_custom_call.1} parent=35 // pred_check
          %p195 = pneg %p83
        $region42: #{tpu_custom_call.1} parent=35 // pred_check_branch
          %197 = sbr.rel (%p195) target = $region44
        $region43: #{tpu_custom_call.1} parent=35 // pred_region
          %199 = dma.done [#allocation6], 128
        $region44: #{tpu_custom_call.1} parent=35 // pred_fallthru
          _
        %p200 = scmp.lt.s32.totalorder %s20, 1
        %s201 = scalar_select %p200, %s20, 1
        %s202 = smul.addr %s201, 8
        %s203 = scalar_lea.vmem %s0, %s202
        %p204 = pneg %p41
        %p205 = pneg %p38
        %p206 = pneg %p62
        %p207 = pneg %p59
        %p208 = pneg %p83
        %p209 = pneg %p80
        %p210 = pneg %p104
        %p211 = pneg %p101
        %p212 = pneg %p130
        %p213 = pneg %p127
        %s214 = sand.u32 %s117, 1
        %s215 = scalar_lea.sflag [#allocation4], %s214
        %s216 = sand.u32 %s117, 1
        %s217 = smul.addr %s216, 8
        %s218 = scalar_lea.vmem [#allocation7], %s217
        %p219 = scmp.lt.s32.totalorder %s20, 1
        %s220 = scalar_select %p219, %s20, 1
        %s221 = smul.addr %s220, 8
        %s222 = scalar_lea.vmem %s0, %s221
        %v223 = vld [vmem:[%s222] sm:$0xff]
        %v224 = vlaneseq
        %v225 = vand.u32 %v224, 127
        %226 = vset.pattern.permute.xlu0 0
        %227 = vperm.xlu0 %226, %v223
        %v228 = vpop.permute.xlu0 %227
        %vm229 = vcmp.eq.s32.totalorder %v225, %v228
        %v230 = vsel %vm229, 1, 0
        %v231 = vcvt.s32.f32 %v230
        %v232 = vld [vmem:[#allocation2] sm:$0xff]
        %233 = vset.pattern.permute.xlu0 1
        %234 = vperm.xlu0 %233, %v223
        %v235 = vpop.permute.xlu0 %234
        %vm236 = vcmp.eq.s32.totalorder %v225, %v235
        %v237 = vsel %vm236, 1, 0
        %v238 = vcvt.s32.f32 %v237
        %v239 = vld [vmem:[#allocation5] sm:$0xff]
        %vm240 = vcmask 64512
        %v242 = vsel %vm240, %v238, 0
        %244 = vmatpush.msra.mxu0 0.0
        %245 = vmatpush.msra.mxu0 0.0
        %246 = vmatpush.msra.mxu0 0.0
        %247 = vmatpush.msra.mxu0 0.0
        %248 = vmatpush.msra.mxu0 0.0
        %249 = vmatpush.msra.mxu0 0.0
        %250 = vmatpush.msra.mxu0 0.0
        %251 = vmatpush.msra.mxu0 0.0
        %252 = vmatpush.msra.mxu0 0.0
        %253 = vmatpush.msra.mxu0 0.0
        %254 = vmatpush.msra.mxu0 0.0
        %255 = vmatpush.msra.mxu0 0.0
        %256 = vmatpush.msra.mxu0 0.0
        %257 = vmatpush.msra.mxu0 0.0
        %258 = vmatpush.msra.mxu0 0.0
        %259 = vmatpush.msra.mxu0 %v239
        %260 = vmatmul.f32.gmra.mxu0 %v242
        %v261 = vpop.f32.mrf.mxu0
        %v262 = vadd.f32 0.0, %v261
        %263 = vdwg.mxu0
        %v265 = vsel %vm240, %v231, 0
        %267 = vmatpush.msra.mxu0 0.0
        %268 = vmatpush.msra.mxu0 0.0
        %269 = vmatpush.msra.mxu0 0.0
        %270 = vmatpush.msra.mxu0 0.0
        %271 = vmatpush.msra.mxu0 0.0
        %272 = vmatpush.msra.mxu0 0.0
        %273 = vmatpush.msra.mxu0 0.0
        %274 = vmatpush.msra.mxu0 0.0
        %275 = vmatpush.msra.mxu0 0.0
        %276 = vmatpush.msra.mxu0 0.0
        %277 = vmatpush.msra.mxu0 0.0
        %278 = vmatpush.msra.mxu0 0.0
        %279 = vmatpush.msra.mxu0 0.0
        %280 = vmatpush.msra.mxu0 0.0
        %281 = vmatpush.msra.mxu0 0.0
        %282 = vmatpush.msra.mxu0 %v232
        %283 = vmatmul.f32.gmra.mxu0 %v265
        %v284 = vpop.f32.mrf.mxu0
        %v285 = vadd.f32 %v262, %v284
        %286 = vdwg.mxu0
        %287 = vset.pattern.permute.xlu0 2
        %288 = vperm.xlu0 %287, %v223
        %v289 = vpop.permute.xlu0 %288
        %vm290 = vcmp.eq.s32.totalorder %v225, %v289
        %v291 = vsel %vm290, 1, 0
        %v292 = vcvt.s32.f32 %v291
        %v293 = vld [vmem:[%s3] sm:$0xff]
        %v294 = vld [vmem:[%s3 + $0x8] sm:$0xff]
        %vm295 = vcmask 130048
        %v297 = vsel %vm295, %v292, 0
        %299 = vmatpush.msra.mxu0 0.0
        %300 = vmatpush.msra.mxu0 0.0
        %301 = vmatpush.msra.mxu0 0.0
        %302 = vmatpush.msra.mxu0 0.0
        %303 = vmatpush.msra.mxu0 0.0
        %304 = vmatpush.msra.mxu0 0.0
        %305 = vmatpush.msra.mxu0 0.0
        %306 = vmatpush.msra.mxu0 0.0
        %307 = vmatpush.msra.mxu0 0.0
        %308 = vmatpush.msra.mxu0 0.0
        %309 = vmatpush.msra.mxu0 0.0
        %310 = vmatpush.msra.mxu0 0.0
        %311 = vmatpush.msra.mxu0 0.0
        %312 = vmatpush.msra.mxu0 0.0
        %313 = vmatpush.msra.mxu0 %v294
        %314 = vmatpush.msra.mxu0 %v293
        %315 = vmatmul.f32.gmra.mxu0 %v297
        %v316 = vpop.f32.mrf.mxu0
        %v317 = vadd.f32 0.0, %v316
        %318 = vdwg.mxu0
        %v319 = vadd.f32 %v285, %v317
        %320 = vst [vmem:[%s218] sm:$0xff] %v319
        %s321 = sand.u32 %s117, 1
        %s322 = scalar_lea.sflag [#allocation4], %s321
        %s323 = sand.u32 %s117, 1
        %s324 = smul.addr %s323, 8
        %s325 = scalar_lea.vmem [#allocation7], %s324
        // Predicated region
        $region45: #{tpu_custom_call.1} parent=35 // pred_check
          %p326 = pneg %p127
        $region46: #{tpu_custom_call.1} parent=35 // pred_check_branch
          %328 = sbr.rel (%p326) target = $region48
        $region47: #{tpu_custom_call.1} parent=35 // pred_region
          %330 = vsyncadd %s322, 0
          %s331 = smul.addr %s20, 8
          %s332 = scalar_lea.hbm %s4, %s331
          %s334 = sshll.u32 %s325, 4
          %s335 = int_to_ptr.vmem [resolvable:$true] %s334
          %s336 = sshll.u32 %s332, 4
          %s337 = int_to_ptr.hbm [resolvable:$true] %s336
          %339 = dma.vmem_to_hbm [thread:$0]  %s335, 128, %s337, %s322
        $region48: #{tpu_custom_call.1} parent=35 // pred_fallthru
          _
      $region36: #{tpu_custom_call.1} parent=5 // pred_fallthru
        _
      %p340 = scmp.le.s32.totalorder 2, %s15
      // Predicated region
      $region49: #{tpu_custom_call.1} parent=5 // pred_check
        %p341 = pneg %p340
      $region50: #{tpu_custom_call.1} parent=5 // pred_check_branch
        %343 = sbr.rel (%p341) target = $region52
      $region51: #{tpu_custom_call.1} parent=5 // pred_region
        %s344 = ssub.s32 %s15, 2
        // Predicated region
        $region53: #{tpu_custom_call.1} parent=51 // pred_check
          %p345 = pneg %p133
        $region54: #{tpu_custom_call.1} parent=51 // pred_check_branch
          %347 = sbr.rel (%p345) target = $region56
        $region55: #{tpu_custom_call.1} parent=51 // pred_region
          %s348 = sand.u32 %s118, 1
          %s349 = scalar_lea.sflag [#allocation4], %s348
          %s350 = sand.u32 %s118, 1
          %s351 = smul.addr %s350, 8
          %s352 = scalar_lea.vmem [#allocation7], %s351
          %354 = dma.done %s349, 128
        $region56: #{tpu_custom_call.1} parent=51 // pred_fallthru
          _
      $region52: #{tpu_custom_call.1} parent=5 // pred_fallthru
        _
    $region6: #{tpu_custom_call.1} parent=1 // loop_footer
      %s19 = sadd.s32 1, %s15
    $region7: #{tpu_custom_call.1} parent=1 // loop_footer_branch
      %14 = sbr.rel target = $region3
    $region8: #{tpu_custom_call.1} parent=1 // loop_exit
      _
    %355 = vsyncpa [#allocation3], 1
    %s356 = scalar_lea.sflag [#allocation3], 1
    %357 = vsyncpa %s356, 1
    %358 = vsyncpa [#allocation6], 1
    %359 = vsyncpa [#allocation4], 1
    %s360 = scalar_lea.sflag [#allocation4], 1
    %361 = vsyncpa %s360, 1

</llo_original>
